<compile_context>
chip_gen: v7x
topology: tpu7x:2x2x1
jax: 0.10.0
libtpu: 0.0.40
codegen_flags: <defaults>
</compile_context>

<pallas_src>
import functools

import jax
import jax.numpy as jnp
from jax.experimental import pallas as pl
from jax.experimental.pallas import tpu as pltpu


def _se_kernel(x_ref, w1t_ref, b1_ref, w2t_ref, b2_ref, o_ref, *, channels_on_lanes):
    # Block layout:
    #   channels_on_lanes=False -> (B, C, HW): HW on lanes, reduce over axis 2.
    #   channels_on_lanes=True  -> (B, HW, C): C on lanes, reduce over axis 1.
    sp_axis = 1 if channels_on_lanes else 2

    # Squeeze: f32 only for the reduction; not kept live across the FC section.
    x = x_ref[...].astype(jnp.float32)
    hw = x.shape[sp_axis]
    se = jnp.sum(x, axis=sp_axis) * (0.5 / hw) + jnp.max(x, axis=sp_axis) * 0.5  # (B, C)

    # fc1 (1x1 conv == channel matmul) + ReLU, batched over the whole tile.
    h = jnp.dot(se, w1t_ref[...], preferred_element_type=jnp.float32) + b1_ref[...]
    h = jnp.maximum(h, 0.0)

    # fc2 + sigmoid gate.
    g = jnp.dot(h, w2t_ref[...], preferred_element_type=jnp.float32) + b2_ref[...]
    gate = jax.nn.sigmoid(g).astype(o_ref.dtype)                                  # (B, C)

    # Excite: re-read the block from VMEM (cheap) and scale by the tiny casted gate.
    if channels_on_lanes:
        o_ref[...] = x_ref[...] * gate[:, None, :]
    else:
        o_ref[...] = x_ref[...] * gate[:, :, None]


def _pick_batch_tile(n, per_image_bytes, target_bytes, prefer_even_grid):
    """Images per grid step for the HBM-bound stream.

    Aim for ~target_bytes per x block (amortizes the ~0.35 us/step pipeline
    overhead) while keeping >= 2 grid steps so fetch/compute overlap (and both
    v7x TensorCores get work).  On v7x additionally prefer an even step count.
    """
    bt = int(max(1, min(n, target_bytes // max(per_image_bytes, 1))))
    if n >= 2:
        bt = min(bt, pl.cdiv(n, 2))            # never collapse to a single grid step
    if prefer_even_grid and n >= 2:
        g = pl.cdiv(n, bt)
        if g % 2:
            bt_even = max(1, pl.cdiv(n, g + 1))
            # Only shrink if the block stays large enough to amortize per-step cost.
            if bt_even * per_image_bytes >= min(target_bytes // 2, 512 << 10):
                bt = bt_even
    return bt


def se_module(x, w1, b1, w2, b2):
    """x: (N, C, H, W); w*: (C, C) 1x1-conv weights; b*: (C,). Returns (N, C, H, W)."""
    N, C, H, W = x.shape
    HW = H * W
    itemsize = jnp.dtype(x.dtype).itemsize

    # Device-generation knobs (fall back to conservative v5e/v6e settings).
    kind = ""
    try:
        kind = jax.devices()[0].device_kind.lower()
    except Exception:
        pass
    is_v7 = "v7" in kind
    target_bytes = (8 << 20) if is_v7 else (2 << 20)

    b_tile = _pick_batch_tile(N, C * HW * itemsize, target_bytes, prefer_even_grid=is_v7)
    grid = (pl.cdiv(N, b_tile),)

    # Put whichever of HW / C is 128-lane friendly on the lane (last) axis so the
    # output stores are full-width vst and the DMA rows are lane-dense.
    channels_on_lanes = (HW % 128 != 0) and (C % 128 == 0 or C >= HW)
    if channels_on_lanes:
        x_flat = x.reshape(N, C, HW).transpose(0, 2, 1)      # (N, HW, C)
        block = (b_tile, HW, C)
    else:
        x_flat = x.reshape(N, C, HW)                          # (N, C, HW)
        block = (b_tile, C, HW)

    # Pre-transpose weights so the kernel computes se @ w_t directly (no XLU transpose).
    w1_t = w1.T
    w2_t = w2.T
    b1_row = b1.reshape(1, C)
    b2_row = b2.reshape(1, C)

    # VMEM budget: in+out x blocks (double-buffered) + params (counted double-buffered,
    # conservative) + slack.  Floor at 16 MiB (v5e default scoped), cap under physical.
    x_tile_bytes = b_tile * C * HW * itemsize
    param_bytes = (2 * C * C * jnp.dtype(w1_t.dtype).itemsize
                   + 2 * C * jnp.dtype(b1_row.dtype).itemsize)
    vmem_need = 4 * x_tile_bytes + 2 * param_bytes + (2 << 20)
    vmem_bytes = int(min(max(vmem_need, 16 << 20), 100 << 20))

    cost = pl.CostEstimate(
        flops=int(3 * N * C * HW + 4 * N * C * C + 2 * N * C),   # sum+max+excite + 2 FCs
        transcendentals=int(N * C),                               # sigmoid
        bytes_accessed=int(2 * N * C * HW * itemsize + param_bytes),
    )

    kernel = functools.partial(_se_kernel, channels_on_lanes=channels_on_lanes)

    out_flat = pl.pallas_call(
        kernel,
        out_shape=jax.ShapeDtypeStruct(x_flat.shape, x.dtype),
        grid_spec=pltpu.PrefetchScalarGridSpec(
            num_scalar_prefetch=0,
            grid=grid,
            in_specs=[
                pl.BlockSpec(block, lambda n: (n, 0, 0)),
                pl.BlockSpec((C, C), lambda n: (0, 0)),   # constant blocks -> DMA'd once,
                pl.BlockSpec((1, C), lambda n: (0, 0)),   # stay resident across the grid
                pl.BlockSpec((C, C), lambda n: (0, 0)),
                pl.BlockSpec((1, C), lambda n: (0, 0)),
            ],
            out_specs=pl.BlockSpec(block, lambda n: (n, 0, 0)),
        ),
        compiler_params=pltpu.CompilerParams(
            dimension_semantics=("parallel",),
            vmem_limit_bytes=vmem_bytes,
        ),
        cost_estimate=cost,
    )(x_flat, w1_t, b1_row, w2_t, b2_row)

    if channels_on_lanes:
        return out_flat.transpose(0, 2, 1).reshape(N, C, H, W)
    return out_flat.reshape(N, C, H, W)


def se_module_ref(x, w1, b1, w2, b2):
    """Pure-JAX reference mirroring the PyTorch forward."""
    mean = jnp.mean(x, axis=(2, 3), keepdims=True)
    amax = jnp.max(x, axis=(2, 3), keepdims=True)
    se = 0.5 * mean + 0.5 * amax                               # (N, C, 1, 1)
    se = jnp.einsum("oc,nchw->nohw", w1, se) + b1[None, :, None, None]
    se = jnp.maximum(se, 0.0)
    se = jnp.einsum("oc,nchw->nohw", w2, se) + b2[None, :, None, None]
    return x * jax.nn.sigmoid(se)


if __name__ == "__main__":
    key = jax.random.PRNGKey(0)
    k_x, k_w1, k_b1, k_w2, k_b2 = jax.random.split(key, 5)

    N, C, H, W = 2, 4, 16, 16
    x = jax.random.normal(k_x, (N, C, H, W), dtype=jnp.float32)

    # Deterministic synthetic parameters (nn.Conv2d(C, C, 1) -> (C, C) weight, (C,) bias)
    w1 = jax.random.normal(k_w1, (C, C), dtype=jnp.float32) * 0.5
    b1 = jax.random.normal(k_b1, (C,), dtype=jnp.float32) * 0.1
    w2 = jax.random.normal(k_w2, (C, C), dtype=jnp.float32) * 0.5
    b2 = jax.random.normal(k_b2, (C,), dtype=jnp.float32) * 0.1

    out = se_module(x, w1, b1, w2, b2)
    out = jax.block_until_ready(out)

    ref = se_module_ref(x, w1, b1, w2, b2)
    assert out.shape == (N, C, H, W)
    assert jnp.allclose(out, ref, atol=1e-5, rtol=1e-5), "mismatch vs reference"

    print("KERNEL_OK")
</pallas_src>

<mosaic_0001>
module attributes {stable_mosaic.version = 11 : i64} {
  func.func @_se_kernel(%arg0: i32, %arg1: memref<1x4x256xf32, #tpu.memory_space<vmem>>, %arg2: memref<4x4xf32, #tpu.memory_space<vmem>>, %arg3: memref<1x4xf32, #tpu.memory_space<vmem>>, %arg4: memref<4x4xf32, #tpu.memory_space<vmem>>, %arg5: memref<1x4xf32, #tpu.memory_space<vmem>>, %arg6: memref<1x4x256xf32, #tpu.memory_space<vmem>>) attributes {dimension_semantics = [#tpu.dimension_semantics<parallel>], iteration_bounds = array<i64: 2>, scalar_prefetch = 0 : i64, scratch_operands = 0 : i64, tpu.core_type = #tpu.core_type<tc>, window_params = [{transform_indices = @transform_0, window_bounds = array<i64: 1, 4, 256>}, {pipeline_mode = #tpu.pipeline_mode<synchronous>, transform_indices = @transform_1, window_bounds = array<i64: 4, 4>}, {pipeline_mode = #tpu.pipeline_mode<synchronous>, transform_indices = @transform_2, window_bounds = array<i64: 1, 4>}, {pipeline_mode = #tpu.pipeline_mode<synchronous>, transform_indices = @transform_3, window_bounds = array<i64: 4, 4>}, {pipeline_mode = #tpu.pipeline_mode<synchronous>, transform_indices = @transform_4, window_bounds = array<i64: 1, 4>}, {transform_indices = @transform_5, window_bounds = array<i64: 1, 4, 256>}]} {
    %c0 = arith.constant 0 : index
    %c0_0 = arith.constant 0 : index
    %c0_1 = arith.constant 0 : index
    %0 = vector.load %arg1[%c0, %c0_0, %c0_1] : memref<1x4x256xf32, #tpu.memory_space<vmem>>, vector<1x4x256xf32>
    %cst = arith.constant dense<0.000000e+00> : vector<1x4xf32>
    %1 = vector.multi_reduction <add>, %0, %cst [2] : vector<1x4x256xf32> to vector<1x4xf32>
    %cst_2 = arith.constant 0.001953125 : f32
    %2 = vector.broadcast %cst_2 : f32 to vector<1x4xf32>
    %3 = arith.mulf %1, %2 : vector<1x4xf32>
    %cst_3 = arith.constant dense<0xFF800000> : vector<1x4xf32>
    %4 = vector.multi_reduction <maximumf>, %0, %cst_3 [2] : vector<1x4x256xf32> to vector<1x4xf32>
    %cst_4 = arith.constant 5.000000e-01 : f32
    %5 = vector.broadcast %cst_4 : f32 to vector<1x4xf32>
    %6 = arith.mulf %4, %5 : vector<1x4xf32>
    %7 = arith.addf %3, %6 : vector<1x4xf32>
    %c0_5 = arith.constant 0 : index
    %c0_6 = arith.constant 0 : index
    %8 = vector.load %arg2[%c0_5, %c0_6] : memref<4x4xf32, #tpu.memory_space<vmem>>, vector<4x4xf32>
    %cst_7 = arith.constant dense<0.000000e+00> : vector<1x4xf32>
    %9 = tpu.matmul %7, %8, %cst_7 {dimension_numbers = #tpu.dot_dimension_numbers<[1], [0], [0], [1], [0, 0, 1, 1], [], []>} : vector<1x4xf32>, vector<4x4xf32>, vector<1x4xf32> -> vector<1x4xf32>
    %c0_8 = arith.constant 0 : index
    %c0_9 = arith.constant 0 : index
    %10 = vector.load %arg3[%c0_8, %c0_9] : memref<1x4xf32, #tpu.memory_space<vmem>>, vector<1x4xf32>
    %11 = arith.addf %9, %10 : vector<1x4xf32>
    %cst_10 = arith.constant 0.000000e+00 : f32
    %12 = vector.broadcast %cst_10 : f32 to vector<1x4xf32>
    %13 = arith.maximumf %11, %12 : vector<1x4xf32>
    %c0_11 = arith.constant 0 : index
    %c0_12 = arith.constant 0 : index
    %14 = vector.load %arg4[%c0_11, %c0_12] : memref<4x4xf32, #tpu.memory_space<vmem>>, vector<4x4xf32>
    %cst_13 = arith.constant dense<0.000000e+00> : vector<1x4xf32>
    %15 = tpu.matmul %13, %14, %cst_13 {dimension_numbers = #tpu.dot_dimension_numbers<[1], [0], [0], [1], [0, 0, 1, 1], [], []>} : vector<1x4xf32>, vector<4x4xf32>, vector<1x4xf32> -> vector<1x4xf32>
    %c0_14 = arith.constant 0 : index
    %c0_15 = arith.constant 0 : index
    %16 = vector.load %arg5[%c0_14, %c0_15] : memref<1x4xf32, #tpu.memory_space<vmem>>, vector<1x4xf32>
    %17 = arith.addf %15, %16 : vector<1x4xf32>
    %18 = arith.negf %17 : vector<1x4xf32>
    %19 = math.exp %18 : vector<1x4xf32>
    %cst_16 = arith.constant 1.000000e+00 : f32
    %20 = vector.broadcast %cst_16 : f32 to vector<1x4xf32>
    %21 = arith.addf %20, %19 : vector<1x4xf32>
    %22 = arith.divf %20, %21 : vector<1x4xf32>
    %c0_17 = arith.constant 0 : index
    %c0_18 = arith.constant 0 : index
    %c0_19 = arith.constant 0 : index
    %23 = vector.load %arg1[%c0_17, %c0_18, %c0_19] : memref<1x4x256xf32, #tpu.memory_space<vmem>>, vector<1x4x256xf32>
    %24 = vector.shape_cast %22 : vector<1x4xf32> to vector<1x4x1xf32>
    %25 = vector.broadcast %24 : vector<1x4x1xf32> to vector<1x4x256xf32>
    %26 = arith.mulf %23, %25 : vector<1x4x256xf32>
    %c0_20 = arith.constant 0 : index
    %c0_21 = arith.constant 0 : index
    %c0_22 = arith.constant 0 : index
    %27 = vector.load %arg6[%c0_20, %c0_21, %c0_22] : memref<1x4x256xf32, #tpu.memory_space<vmem>>, vector<1x4x256xf32>
    tpu.vector_store %arg6[%c0_20, %c0_21, %c0_22], %26 {strides = array<i32>} : memref<1x4x256xf32, #tpu.memory_space<vmem>>, vector<1x4x256xf32>,
    return
  }
  func.func @transform_0(%arg0: i32) -> (i32, i32, i32) {
    %c0_i32 = arith.constant 0 : i32
    %c0_i32_0 = arith.constant 0 : i32
    %c0_i32_1 = arith.constant 0 : i32
    return %arg0, %c0_i32, %c0_i32_0 : i32, i32, i32
  }
  func.func @transform_1(%arg0: i32) -> (i32, i32) {
    %c0_i32 = arith.constant 0 : i32
    %c0_i32_0 = arith.constant 0 : i32
    %c0_i32_1 = arith.constant 0 : i32
    return %c0_i32, %c0_i32_0 : i32, i32
  }
  func.func @transform_2(%arg0: i32) -> (i32, i32) {
    %c0_i32 = arith.constant 0 : i32
    %c0_i32_0 = arith.constant 0 : i32
    %c0_i32_1 = arith.constant 0 : i32
    return %c0_i32, %c0_i32_0 : i32, i32
  }
  func.func @transform_3(%arg0: i32) -> (i32, i32) {
    %c0_i32 = arith.constant 0 : i32
    %c0_i32_0 = arith.constant 0 : i32
    %c0_i32_1 = arith.constant 0 : i32
    return %c0_i32, %c0_i32_0 : i32, i32
  }
  func.func @transform_4(%arg0: i32) -> (i32, i32) {
    %c0_i32 = arith.constant 0 : i32
    %c0_i32_0 = arith.constant 0 : i32
    %c0_i32_1 = arith.constant 0 : i32
    return %c0_i32, %c0_i32_0 : i32, i32
  }
  func.func @transform_5(%arg0: i32) -> (i32, i32, i32) {
    %c0_i32 = arith.constant 0 : i32
    %c0_i32_0 = arith.constant 0 : i32
    %c0_i32_1 = arith.constant 0 : i32
    return %arg0, %c0_i32, %c0_i32_0 : i32, i32, i32
  }
}

</mosaic_0001>

<llo_original>
// kernel: tpu_custom_call.1
$region0: #{tpu_custom_call.1}
  #allocation0 [shape = 'u32[]', space=smem, size = 0x4, offset = 0x4, fixed_abs, tag = 'smem constant byte address 0x4 - core index']
  #allocation1 [shape = 'u32[144,128]{1,0:T(1,128)}', space=vmem, size = 0x12000, scoped, tag = 'internal scratch']
  %s0 = inlined_call_operand.hbm [shape: f32[2,4,256], index: 0, kind: input, shape index: {}]
  %s1 = inlined_call_operand.hbm [shape: f32[4,4], index: 1, kind: input, shape index: {}]
  %s2 = inlined_call_operand.vmem [shape: f32[1,4], index: 2, kind: input, shape index: {}]
  %s3 = inlined_call_operand.vmem [shape: f32[4,4], index: 3, kind: input, shape index: {}]
  %s4 = inlined_call_operand.vmem [shape: f32[1,4], index: 4, kind: input, shape index: {}]
  %s5 = inlined_call_operand.hbm [shape: f32[2,4,256], index: 5, kind: output, shape index: {}]
  %s6 = sld [smem:[#allocation0]]
  $region61: #{tpu_custom_call.1} parent=0
    _
  %s8 = ssub.s32 1, %s6
  %s9 = scalar_select 0, %s8, %s6
  $region1: #{tpu_custom_call.1} parent=0
    #allocation2 [shape = 'u8[8192]{0}', space=vmem, size = 0x2000, scoped, tag = 'input window, operand 0']
    #allocation3 [shape = 's32[2]{0}', space=sflag, size = 0x8, scoped, tag = 'scoped memory for tpu_custom_call.1']
    #allocation4 [shape = 's32[2]{0}', space=sflag, size = 0x8, scoped, tag = 'scoped memory for tpu_custom_call.1']
    #allocation5 [shape = 'u8[2048]{0}', space=vmem, size = 0x800, scoped, tag = 'input window, operand 1, single buffered']
    #allocation6 [shape = 's32[1]{0}', space=sflag, size = 0x4, scoped, tag = 'scoped memory for tpu_custom_call.1']
    #allocation7 [shape = 'u8[8192]{0}', space=vmem, size = 0x2000, scoped, tag = 'output window, operand 0']
    %10 = vsyncpa [#allocation3], 0
    %s11 = scalar_lea.sflag [#allocation3], 1
    %12 = vsyncpa %s11, 0
    %13 = vsyncpa [#allocation6], 0
    %14 = vsyncpa [#allocation4], 0
    %s15 = scalar_lea.sflag [#allocation4], 1
    %16 = vsyncpa %s15, 0
    loop: start=0, step=1, limit=4
    $region2: #{tpu_custom_call.1} parent=1 // loop_pre_header
      _
    $region3: #{tpu_custom_call.1} parent=1 // loop_header
      %s18 = sphi 0, %s22
      %p19 = scmp.ge.s32.totalorder %s18, 4
      %s28 = sphi 0, %s30
      %s31 = sphi 0, %s28
      %s32 = sphi 0, %s31
      %s48 = sphi 0, %s32
      %s52 = sphi 0, %s52
      %s54 = sphi 0, %s52
      %s55 = sphi 0, %s54
      %s69 = sphi 0, %s55
      %s73 = sphi 0, %s73
      %s75 = sphi 0, %s73
      %s76 = sphi 0, %s75
      %s90 = sphi 0, %s76
      %s94 = sphi 0, %s94
      %s96 = sphi 0, %s94
      %s97 = sphi 0, %s96
      %s111 = sphi 0, %s97
      %s115 = sphi 0, %s115
      %s117 = sphi 0, %s115
      %s118 = sphi 0, %s117
      %s132 = sphi 0, %s118
      %s138 = sphi 0, %s140
      %s141 = sphi 0, %s138
      %s142 = sphi 0, %s141
      %s158 = sphi 0, %s142
    $region4: #{tpu_custom_call.1} parent=1 // loop_header_branch
      %21 = sbr.rel (%p19) target = $region8
    $region5: #{tpu_custom_call.1} parent=1 // loop_body
      %s23 = ssub.s32 %s18, 1
      %s24 = ssub.s32 %s18, 2
      %s25 = sadd.s32 %s18, 1
      %s26 = ssub.s32 %s18, %s25
      %p27 = scmp.eq.s32.totalorder %s26, 0
      %s29 = sadd.s32 %s28, 1
      %s30 = scalar_select %p27, %s28, %s29
      %p33 = pneg %p27
      %p34 = scmp.eq.s32.totalorder %s18, 1
      %p35 = por %p33, %p34
      %p36 = scmp.ne.s32.totalorder %s28, %s31
      %p37 = scmp.eq.s32.totalorder %s18, 0
      %p38 = por %p36, %p37
      %p39 = scmp.ne.s32.totalorder %s28, %s31
      %p40 = scmp.eq.s32.totalorder %s23, 1
      %p41 = por %p39, %p40
      %p42 = scmp.ne.s32.totalorder %s31, %s32
      %p43 = scmp.eq.s32.totalorder %s23, 0
      %p44 = por %p42, %p43
      %p45 = scmp.ne.s32.totalorder %s31, %s32
      %p46 = scmp.eq.s32.totalorder %s24, 1
      %p47 = por %p45, %p46
      %p49 = scmp.ne.s32.totalorder %s32, %s48
      %p50 = scmp.eq.s32.totalorder %s24, 0
      %p51 = por %p49, %p50
      %s53 = sadd.s32 %s52, 1
      %p56 = scmp.eq.s32.totalorder %s18, 1
      %p57 = scmp.ne.s32.totalorder %s52, %s54
      %p58 = scmp.eq.s32.totalorder %s18, 0
      %p59 = por %p57, %p58
      %p60 = scmp.ne.s32.totalorder %s52, %s54
      %p61 = scmp.eq.s32.totalorder %s23, 1
      %p62 = por %p60, %p61
      %p63 = scmp.ne.s32.totalorder %s54, %s55
      %p64 = scmp.eq.s32.totalorder %s23, 0
      %p65 = por %p63, %p64
      %p66 = scmp.ne.s32.totalorder %s54, %s55
      %p67 = scmp.eq.s32.totalorder %s24, 1
      %p68 = por %p66, %p67
      %p70 = scmp.ne.s32.totalorder %s55, %s69
      %p71 = scmp.eq.s32.totalorder %s24, 0
      %p72 = por %p70, %p71
      %s74 = sadd.s32 %s73, 1
      %p77 = scmp.eq.s32.totalorder %s18, 1
      %p78 = scmp.ne.s32.totalorder %s73, %s75
      %p79 = scmp.eq.s32.totalorder %s18, 0
      %p80 = por %p78, %p79
      %p81 = scmp.ne.s32.totalorder %s73, %s75
      %p82 = scmp.eq.s32.totalorder %s23, 1
      %p83 = por %p81, %p82
      %p84 = scmp.ne.s32.totalorder %s75, %s76
      %p85 = scmp.eq.s32.totalorder %s23, 0
      %p86 = por %p84, %p85
      %p87 = scmp.ne.s32.totalorder %s75, %s76
      %p88 = scmp.eq.s32.totalorder %s24, 1
      %p89 = por %p87, %p88
      %p91 = scmp.ne.s32.totalorder %s76, %s90
      %p92 = scmp.eq.s32.totalorder %s24, 0
      %p93 = por %p91, %p92
      %s95 = sadd.s32 %s94, 1
      %p98 = scmp.eq.s32.totalorder %s18, 1
      %p99 = scmp.ne.s32.totalorder %s94, %s96
      %p100 = scmp.eq.s32.totalorder %s18, 0
      %p101 = por %p99, %p100
      %p102 = scmp.ne.s32.totalorder %s94, %s96
      %p103 = scmp.eq.s32.totalorder %s23, 1
      %p104 = por %p102, %p103
      %p105 = scmp.ne.s32.totalorder %s96, %s97
      %p106 = scmp.eq.s32.totalorder %s23, 0
      %p107 = por %p105, %p106
      %p108 = scmp.ne.s32.totalorder %s96, %s97
      %p109 = scmp.eq.s32.totalorder %s24, 1
      %p110 = por %p108, %p109
      %p112 = scmp.ne.s32.totalorder %s97, %s111
      %p113 = scmp.eq.s32.totalorder %s24, 0
      %p114 = por %p112, %p113
      %s116 = sadd.s32 %s115, 1
      %p119 = scmp.eq.s32.totalorder %s18, 1
      %p120 = scmp.ne.s32.totalorder %s115, %s117
      %p121 = scmp.eq.s32.totalorder %s18, 0
      %p122 = por %p120, %p121
      %p123 = scmp.ne.s32.totalorder %s115, %s117
      %p124 = scmp.eq.s32.totalorder %s23, 1
      %p125 = por %p123, %p124
      %p126 = scmp.ne.s32.totalorder %s117, %s118
      %p127 = scmp.eq.s32.totalorder %s23, 0
      %p128 = por %p126, %p127
      %p129 = scmp.ne.s32.totalorder %s117, %s118
      %p130 = scmp.eq.s32.totalorder %s24, 1
      %p131 = por %p129, %p130
      %p133 = scmp.ne.s32.totalorder %s118, %s132
      %p134 = scmp.eq.s32.totalorder %s24, 0
      %p135 = por %p133, %p134
      %s136 = ssub.s32 %s18, %s25
      %p137 = scmp.eq.s32.totalorder %s136, 0
      %s139 = sadd.s32 %s138, 1
      %s140 = scalar_select %p137, %s138, %s139
      %p143 = pneg %p137
      %p144 = scmp.eq.s32.totalorder %s18, 1
      %p145 = por %p143, %p144
      %p146 = scmp.ne.s32.totalorder %s138, %s141
      %p147 = scmp.eq.s32.totalorder %s18, 0
      %p148 = por %p146, %p147
      %p149 = scmp.ne.s32.totalorder %s138, %s141
      %p150 = scmp.eq.s32.totalorder %s23, 1
      %p151 = por %p149, %p150
      %p152 = scmp.ne.s32.totalorder %s141, %s142
      %p153 = scmp.eq.s32.totalorder %s23, 0
      %p154 = por %p152, %p153
      %p155 = scmp.ne.s32.totalorder %s141, %s142
      %p156 = scmp.eq.s32.totalorder %s24, 1
      %p157 = por %p155, %p156
      %p159 = scmp.ne.s32.totalorder %s142, %s158
      %p160 = scmp.eq.s32.totalorder %s24, 0
      %p161 = por %p159, %p160
      %p162 = scmp.le.s32.totalorder 1, %s18
      %p163 = scmp.lt.s32.totalorder %s18, 3
      %p164 = pnand %p162, %p163
      %p165 = pneg %p164
      // Predicated region
      $region9: #{tpu_custom_call.1} parent=5 // pred_check
        _
      $region10: #{tpu_custom_call.1} parent=5 // pred_check_branch
        %167 = sbr.rel (%p164) target = $region12
      $region11: #{tpu_custom_call.1} parent=5 // pred_region
        %s168 = ssub.s32 %s18, 1
        // Predicated region
        $region13: #{tpu_custom_call.1} parent=11 // pred_check
          %p169 = pneg %p65
        $region14: #{tpu_custom_call.1} parent=11 // pred_check_branch
          %171 = sbr.rel (%p169) target = $region16
        $region15: #{tpu_custom_call.1} parent=11 // pred_region
          %s173 = ssub.s32 64, 64
          %174 = vsyncadd [#allocation6], %s173
          %s176 = sshll.u32 [#allocation5], 4
          %s177 = int_to_ptr.vmem [resolvable:$true] %s176
          %179 = dma.hbm_to_vmem [thread:$0]  %s1, 64, %s177, [#allocation6]
        $region16: #{tpu_custom_call.1} parent=11 // pred_fallthru
          _
        // Predicated region
        $region17: #{tpu_custom_call.1} parent=11 // pred_check
          %p180 = pneg %p86
        $region18: #{tpu_custom_call.1} parent=11 // pred_check_branch
          %182 = sbr.rel (%p180) target = $region20
        $region19: #{tpu_custom_call.1} parent=11 // pred_region
          _
        $region20: #{tpu_custom_call.1} parent=11 // pred_fallthru
          _
        // Predicated region
        $region21: #{tpu_custom_call.1} parent=11 // pred_check
          %p183 = pneg %p107
        $region22: #{tpu_custom_call.1} parent=11 // pred_check_branch
          %185 = sbr.rel (%p183) target = $region24
        $region23: #{tpu_custom_call.1} parent=11 // pred_region
          _
        $region24: #{tpu_custom_call.1} parent=11 // pred_fallthru
          _
        // Predicated region
        $region25: #{tpu_custom_call.1} parent=11 // pred_check
          %p186 = pneg %p128
        $region26: #{tpu_custom_call.1} parent=11 // pred_check_branch
          %188 = sbr.rel (%p186) target = $region28
        $region27: #{tpu_custom_call.1} parent=11 // pred_region
          _
        $region28: #{tpu_custom_call.1} parent=11 // pred_fallthru
          _
      $region12: #{tpu_custom_call.1} parent=5 // pred_fallthru
        _
      %p189 = scmp.lt.s32.totalorder %s18, 2
      // Predicated region
      $region29: #{tpu_custom_call.1} parent=5 // pred_check
        %p190 = pneg %p189
      $region30: #{tpu_custom_call.1} parent=5 // pred_check_branch
        %192 = sbr.rel (%p190) target = $region32
      $region31: #{tpu_custom_call.1} parent=5 // pred_region
        // Predicated region
        $region33: #{tpu_custom_call.1} parent=31 // pred_check
          %p193 = pneg %p38
        $region34: #{tpu_custom_call.1} parent=31 // pred_check_branch
          %195 = sbr.rel (%p193) target = $region36
        $region35: #{tpu_custom_call.1} parent=31 // pred_region
          %s196 = sand.u32 %s28, 1
          %s197 = scalar_lea.sflag [#allocation3], %s196
          %s198 = sand.u32 %s28, 1
          %s199 = smul.addr %s198, 8
          %s200 = scalar_lea.vmem [#allocation2], %s199
          %s202 = ssub.s32 128, 128
          %203 = vsyncadd %s197, %s202
          %s204 = smul.addr %s18, 2
          %s205 = smul.addr %s204, 64
          %s206 = scalar_lea.hbm %s0, %s205
          %s208 = sshll.u32 %s200, 4
          %s209 = int_to_ptr.vmem [resolvable:$true] %s208
          %211 = dma.hbm_to_vmem [thread:$0]  %s206, 128, %s209, %s197
        $region36: #{tpu_custom_call.1} parent=31 // pred_fallthru
          _
      $region32: #{tpu_custom_call.1} parent=5 // pred_fallthru
        _
      %p212 = scmp.le.s32.totalorder 1, %s18
      %p213 = scmp.lt.s32.totalorder %s18, 3
      %p214 = pnand %p212, %p213
      %p215 = pneg %p214
      // Predicated region
      $region37: #{tpu_custom_call.1} parent=5 // pred_check
        _
      $region38: #{tpu_custom_call.1} parent=5 // pred_check_branch
        %217 = sbr.rel (%p214) target = $region40
      $region39: #{tpu_custom_call.1} parent=5 // pred_region
        %s218 = ssub.s32 %s18, 1
        %s219 = sand.u32 %s31, 1
        %s220 = scalar_lea.sflag [#allocation3], %s219
        %s221 = sand.u32 %s31, 1
        %s222 = smul.addr %s221, 8
        %s223 = scalar_lea.vmem [#allocation2], %s222
        // Predicated region
        $region41: #{tpu_custom_call.1} parent=39 // pred_check
          %p224 = pneg %p44
        $region42: #{tpu_custom_call.1} parent=39 // pred_check_branch
          %226 = sbr.rel (%p224) target = $region44
        $region43: #{tpu_custom_call.1} parent=39 // pred_region
          %227 = dma.done %s220, 128
        $region44: #{tpu_custom_call.1} parent=39 // pred_fallthru
          _
        // Predicated region
        $region45: #{tpu_custom_call.1} parent=39 // pred_check
          %p228 = pneg %p65
        $region46: #{tpu_custom_call.1} parent=39 // pred_check_branch
          %230 = sbr.rel (%p228) target = $region48
        $region47: #{tpu_custom_call.1} parent=39 // pred_region
          %231 = dma.done [#allocation6], 64
        $region48: #{tpu_custom_call.1} parent=39 // pred_fallthru
          _
        %s232 = sand.u32 %s31, 1
        %s233 = scalar_lea.sflag [#allocation3], %s232
        %s234 = sand.u32 %s31, 1
        %s235 = smul.addr %s234, 8
        %s236 = scalar_lea.vmem [#allocation2], %s235
        %p237 = pneg %p44
        %p238 = pneg %p41
        %p239 = pneg %p65
        %p240 = pneg %p62
        %p241 = pneg %p86
        %p242 = pneg %p83
        %p243 = pneg %p107
        %p244 = pneg %p104
        %p245 = pneg %p128
        %p246 = pneg %p125
        %p247 = pneg %p154
        %p248 = pneg %p151
        %s249 = sand.u32 %s141, 1
        %s250 = scalar_lea.sflag [#allocation4], %s249
        %s251 = sand.u32 %s141, 1
        %s252 = smul.addr %s251, 8
        %s253 = scalar_lea.vmem [#allocation7], %s252
        %v254 = vld [vmem:[%s223] sm:$0xff]
        %v256 = vcombine.high %v254, %v254
        %vm258 = vcmask 1043456
        %v259 = vsel %vm258, %v254, 0.0
        %v260 = vsel %vm258, %v256, 0.0
        %v261 = vadd.f32 %v259, %v260
        %262 = vadd.xlane.f32.xlu0 %v261
        %v263 = vpop.xlane.xlu0 %262
        %v264 = vmul.f32 %v263, 0.001953125
        %v265 = vsel %vm258, %v254, -inf
        %v266 = vsel %vm258, %v256, -inf
        %v267 = vmax.f32 %v265, %v266
        %268 = vmax.xlane.f32.xlu0 %v267
        %v269 = vpop.xlane.xlu0 %268
        %v270 = vmul.f32 %v269, 0.5
        %v271 = vadd.f32 %v264, %v270
        %v272 = vld [vmem:[#allocation5] sm:$0xf]
        %v273 = vld [vmem:[%s2] sm:$0x1]
        %v275 = vlaneseq
        %v276 = vand.u32 %v275, 127
        %v277 = vlaneseq
        %v278 = vshrl.u32 %v277, 7
        %v279 = vsub.s32 %v276, %v278
        %v280 = vrot.slane %v271, %v279
        %vm281 = vcmask 31744
        %v282 = vsel %vm281, %v280, 0
        %v285 = vsel %vm258, %v272, 0
        %287 = vmatprep.subr.mxu0 0.0
        %288 = vmatpush1.msra.mxu0 %v285
        %289 = vmatprep.subr.mxu0 0.0
        %290 = vmatpush1.msra.mxu0 0.0
        %291 = vmatprep.subr.mxu0 0.0
        %292 = vmatpush1.msra.mxu0 0.0
        %293 = vmatprep.subr.mxu0 0.0
        %294 = vmatpush1.msra.mxu0 0.0
        %295 = vmatprep.subr.mxu0 0.0
        %296 = vmatpush1.msra.mxu0 0.0
        %297 = vmatprep.subr.mxu0 0.0
        %298 = vmatpush1.msra.mxu0 0.0
        %299 = vmatprep.subr.mxu0 0.0
        %300 = vmatpush1.msra.mxu0 0.0
        %301 = vmatprep.subr.mxu0 0.0
        %302 = vmatpush1.msra.mxu0 0.0
        %303 = vmatprep.subr.mxu0 0.0
        %304 = vmatpush1.msra.mxu0 0.0
        %305 = vmatprep.subr.mxu0 0.0
        %306 = vmatpush1.msra.mxu0 0.0
        %307 = vmatprep.subr.mxu0 0.0
        %308 = vmatpush1.msra.mxu0 0.0
        %309 = vmatprep.subr.mxu0 0.0
        %310 = vmatpush1.msra.mxu0 0.0
        %311 = vmatprep.subr.mxu0 0.0
        %312 = vmatpush1.msra.mxu0 0.0
        %313 = vmatprep.subr.mxu0 0.0
        %314 = vmatpush1.msra.mxu0 0.0
        %315 = vmatprep.subr.mxu0 0.0
        %316 = vmatpush1.msra.mxu0 0.0
        %317 = vmatprep.subr.mxu0 0.0
        %318 = vmatpush1.msra.mxu0 0.0
        %319 = vmatprep.subr.mxu0 0.0
        %320 = vmatpush1.msra.mxu0 0.0
        %321 = vmatprep.subr.mxu0 0.0
        %322 = vmatpush1.msra.mxu0 0.0
        %323 = vmatprep.subr.mxu0 0.0
        %324 = vmatpush1.msra.mxu0 0.0
        %325 = vmatprep.subr.mxu0 0.0
        %326 = vmatpush1.msra.mxu0 0.0
        %327 = vmatprep.subr.mxu0 0.0
        %328 = vmatpush1.msra.mxu0 0.0
        %329 = vmatprep.subr.mxu0 0.0
        %330 = vmatpush1.msra.mxu0 0.0
        %331 = vmatprep.subr.mxu0 0.0
        %332 = vmatpush1.msra.mxu0 0.0
        %333 = vmatprep.subr.mxu0 0.0
        %334 = vmatpush1.msra.mxu0 0.0
        %335 = vmatprep.subr.mxu0 0.0
        %336 = vmatpush1.msra.mxu0 0.0
        %337 = vmatprep.subr.mxu0 0.0
        %338 = vmatpush1.msra.mxu0 0.0
        %339 = vmatprep.subr.mxu0 0.0
        %340 = vmatpush1.msra.mxu0 0.0
        %341 = vmatprep.subr.mxu0 0.0
        %342 = vmatpush1.msra.mxu0 0.0
        %343 = vmatprep.subr.mxu0 0.0
        %344 = vmatpush1.msra.mxu0 0.0
        %345 = vmatprep.subr.mxu0 0.0
        %346 = vmatpush1.msra.mxu0 0.0
        %347 = vmatprep.subr.mxu0 0.0
        %348 = vmatpush1.msra.mxu0 0.0
        %349 = vmatprep.subr.mxu0 0.0
        %350 = vmatpush1.msra.mxu0 0.0
        %351 = vmatprep.mubr.f32.mxu0 0.0
        %352 = vmatmul.mubr.f32.gmra.mrb[0].mxu0 %v282
        %v353 = vpop.f32.mrb[0].mxu0
        %v354 = vadd.f32 %v273, %v353
        %v355 = vpop.f32.mrb[0].mxu0
        %356 = vdwg.mxu0
        %v357 = vmax.f32 %v354, 0.0
        %v358 = vld [vmem:[%s3] sm:$0xf]
        %v359 = vld [vmem:[%s4] sm:$0x1]
        %v361 = vsel %vm281, %v357, 0
        %v364 = vsel %vm258, %v358, 0
        %366 = vmatprep.subr.mxu0 0.0
        %367 = vmatpush1.msra.mxu0 %v364
        %368 = vmatprep.subr.mxu0 0.0
        %369 = vmatpush1.msra.mxu0 0.0
        %370 = vmatprep.subr.mxu0 0.0
        %371 = vmatpush1.msra.mxu0 0.0
        %372 = vmatprep.subr.mxu0 0.0
        %373 = vmatpush1.msra.mxu0 0.0
        %374 = vmatprep.subr.mxu0 0.0
        %375 = vmatpush1.msra.mxu0 0.0
        %376 = vmatprep.subr.mxu0 0.0
        %377 = vmatpush1.msra.mxu0 0.0
        %378 = vmatprep.subr.mxu0 0.0
        %379 = vmatpush1.msra.mxu0 0.0
        %380 = vmatprep.subr.mxu0 0.0
        %381 = vmatpush1.msra.mxu0 0.0
        %382 = vmatprep.subr.mxu0 0.0
        %383 = vmatpush1.msra.mxu0 0.0
        %384 = vmatprep.subr.mxu0 0.0
        %385 = vmatpush1.msra.mxu0 0.0
        %386 = vmatprep.subr.mxu0 0.0
        %387 = vmatpush1.msra.mxu0 0.0
        %388 = vmatprep.subr.mxu0 0.0
        %389 = vmatpush1.msra.mxu0 0.0
        %390 = vmatprep.subr.mxu0 0.0
        %391 = vmatpush1.msra.mxu0 0.0
        %392 = vmatprep.subr.mxu0 0.0
        %393 = vmatpush1.msra.mxu0 0.0
        %394 = vmatprep.subr.mxu0 0.0
        %395 = vmatpush1.msra.mxu0 0.0
        %396 = vmatprep.subr.mxu0 0.0
        %397 = vmatpush1.msra.mxu0 0.0
        %398 = vmatprep.subr.mxu0 0.0
        %399 = vmatpush1.msra.mxu0 0.0
        %400 = vmatprep.subr.mxu0 0.0
        %401 = vmatpush1.msra.mxu0 0.0
        %402 = vmatprep.subr.mxu0 0.0
        %403 = vmatpush1.msra.mxu0 0.0
        %404 = vmatprep.subr.mxu0 0.0
        %405 = vmatpush1.msra.mxu0 0.0
        %406 = vmatprep.subr.mxu0 0.0
        %407 = vmatpush1.msra.mxu0 0.0
        %408 = vmatprep.subr.mxu0 0.0
        %409 = vmatpush1.msra.mxu0 0.0
        %410 = vmatprep.subr.mxu0 0.0
        %411 = vmatpush1.msra.mxu0 0.0
        %412 = vmatprep.subr.mxu0 0.0
        %413 = vmatpush1.msra.mxu0 0.0
        %414 = vmatprep.subr.mxu0 0.0
        %415 = vmatpush1.msra.mxu0 0.0
        %416 = vmatprep.subr.mxu0 0.0
        %417 = vmatpush1.msra.mxu0 0.0
        %418 = vmatprep.subr.mxu0 0.0
        %419 = vmatpush1.msra.mxu0 0.0
        %420 = vmatprep.subr.mxu0 0.0
        %421 = vmatpush1.msra.mxu0 0.0
        %422 = vmatprep.subr.mxu0 0.0
        %423 = vmatpush1.msra.mxu0 0.0
        %424 = vmatprep.subr.mxu0 0.0
        %425 = vmatpush1.msra.mxu0 0.0
        %426 = vmatprep.subr.mxu0 0.0
        %427 = vmatpush1.msra.mxu0 0.0
        %428 = vmatprep.subr.mxu0 0.0
        %429 = vmatpush1.msra.mxu0 0.0
        %430 = vmatprep.mubr.f32.mxu0 0.0
        %431 = vmatmul.mubr.f32.gmra.mrb[0].mxu0 %v361
        %v432 = vpop.f32.mrb[0].mxu0
        %v433 = vadd.f32 %v359, %v432
        %v434 = vpop.f32.mrb[0].mxu0
        %435 = vdwg.mxu0
        %v436 = vxor.u32 %v433, 2147483648
        %v437 = vmul.f32 %v436, 1.442695
        %v438 = vpow.pop %v437
        %v439 = vadd.f32 %v438, 1.0
        %v440 = vrcp.pop %v439
        %v441 = vmul.f32 1.0, %v440
        %v442 = vlaneseq
        %v443 = vshrl.u32 %v442, 7
        %v444 = vsub.s32 0, %v443
        %v445 = vrot.slane %v441, %v444
        %447 = vbcast.lane.b32.xlu0 %v445, 256
        %v448 = vpop.permute.xlu0 %447
        %v451 = vunpack.c.l.s4 839922192
        %v452 = vunpack.c.0.s8 %v451
        %v453 = vlaneseq
        %v454 = vshrl.u32 %v453, 7
        %v455 = vsub.s32 %v452, %v454
        %v456 = vrot.slane %v448, %v455
        %v458 = vmul.f32 %v254, %v456
        %459 = vst [vmem:[%s253] sm:$0xff] %v458
        %s460 = sand.u32 %s141, 1
        %s461 = scalar_lea.sflag [#allocation4], %s460
        %s462 = sand.u32 %s141, 1
        %s463 = smul.addr %s462, 8
        %s464 = scalar_lea.vmem [#allocation7], %s463
        // Predicated region
        $region49: #{tpu_custom_call.1} parent=39 // pred_check
          %p465 = pneg %p151
        $region50: #{tpu_custom_call.1} parent=39 // pred_check_branch
          %467 = sbr.rel (%p465) target = $region52
        $region51: #{tpu_custom_call.1} parent=39 // pred_region
          %s469 = ssub.s32 128, 128
          %470 = vsyncadd %s461, %s469
          %s471 = smul.addr %s23, 2
          %s472 = smul.addr %s471, 64
          %s473 = scalar_lea.hbm %s5, %s472
          %s475 = sshll.u32 %s464, 4
          %s476 = int_to_ptr.vmem [resolvable:$true] %s475
          %478 = dma.vmem_to_hbm [thread:$0]  %s476, 128, %s473, %s461
        $region52: #{tpu_custom_call.1} parent=39 // pred_fallthru
          _
      $region40: #{tpu_custom_call.1} parent=5 // pred_fallthru
        _
      %p479 = scmp.le.s32.totalorder 2, %s18
      // Predicated region
      $region53: #{tpu_custom_call.1} parent=5 // pred_check
        %p480 = pneg %p479
      $region54: #{tpu_custom_call.1} parent=5 // pred_check_branch
        %482 = sbr.rel (%p480) target = $region56
      $region55: #{tpu_custom_call.1} parent=5 // pred_region
        %s483 = ssub.s32 %s18, 2
        // Predicated region
        $region57: #{tpu_custom_call.1} parent=55 // pred_check
          %p484 = pneg %p157
        $region58: #{tpu_custom_call.1} parent=55 // pred_check_branch
          %486 = sbr.rel (%p484) target = $region60
        $region59: #{tpu_custom_call.1} parent=55 // pred_region
          %s487 = sand.u32 %s142, 1
          %s488 = scalar_lea.sflag [#allocation4], %s487
          %s489 = sand.u32 %s142, 1
          %s490 = smul.addr %s489, 8
          %s491 = scalar_lea.vmem [#allocation7], %s490
          %492 = dma.done %s488, 128
        $region60: #{tpu_custom_call.1} parent=55 // pred_fallthru
          _
      $region56: #{tpu_custom_call.1} parent=5 // pred_fallthru
        _
    $region6: #{tpu_custom_call.1} parent=1 // loop_footer
      %s22 = sadd.s32 1, %s18
    $region7: #{tpu_custom_call.1} parent=1 // loop_footer_branch
      %17 = sbr.rel target = $region3
    $region8: #{tpu_custom_call.1} parent=1 // loop_exit
      _
    %493 = vsyncpa [#allocation3], 1
    %s494 = scalar_lea.sflag [#allocation3], 1
    %495 = vsyncpa %s494, 1
    %496 = vsyncpa [#allocation6], 1
    %497 = vsyncpa [#allocation4], 1
    %s498 = scalar_lea.sflag [#allocation4], 1
    %499 = vsyncpa %s498, 1

</llo_original>
